<compile_context>
chip_gen: v6e
topology: v6e:2x2x1
jax: 0.10.0
libtpu: 0.0.40
codegen_flags: <defaults>
</compile_context>

<pallas_src>
from functools import partial

import jax
import jax.numpy as jnp
import numpy as np
from jax.experimental import pallas as pl
from jax.experimental.pallas import tpu as pltpu

LANE = 128
SUBLANE = 8


def _round_up(x, m):
    return ((x + m - 1) // m) * m


# ----------------------------------------------------------------------------- kernel


def _mlp_kernel(x_ref, params_ref, out_ref, *, in_pad, num_hidden, out_pad, w0_off, wh_off):
    """Fused MLP forward on one batch tile.

    params_ref layout (all rows are C(=128)-lane wide, zero padded):
      rows [0 : L+1)                    -> bias of linear i in row i
      rows [w0_off : w0_off + in_pad)   -> W0 (concat [state; action] weight), zero-padded rows
      rows [wh_off + (i-1)*C : ... + C) -> W_i as a (C, C) zero-padded block, i = 1..L
    """
    num_linear = num_hidden + 1
    C = params_ref.shape[1]
    cdt = params_ref.dtype  # f32 by default; bf16 if pack_params(param_dtype=bf16)

    # ---- layer 0: single K=in_pad dot on the pre-concatenated [state; action] tile.
    w0 = params_ref[w0_off:w0_off + in_pad, :]
    b0 = params_ref[0:1, :].astype(jnp.float32)
    h = jnp.dot(x_ref[...].astype(cdt), w0, preferred_element_type=jnp.float32) + b0
    if num_hidden >= 1:
        h = jnp.maximum(h, 0.0)  # ReLU

    # ---- hidden + output layers: (TB, C) @ (C, C); padded rows/cols are zero -> exact.
    for i in range(1, num_linear):
        r0 = wh_off + (i - 1) * C
        w = params_ref[r0:r0 + C, :]
        b = params_ref[i:i + 1, :].astype(jnp.float32)
        h = jnp.dot(h.astype(cdt), w, preferred_element_type=jnp.float32) + b
        if i < num_hidden:
            h = jnp.maximum(h, 0.0)

    # Narrow store: only the first out_pad lanes go back to HBM.
    out_ref[...] = h[:, :out_pad].astype(out_ref.dtype)


# ----------------------------------------------------------------------------- packing (host-side, once)


def pack_params(weights, biases, state_dim, action_dim, param_dtype=jnp.float32):
    """Pack all (zero-padded) weights/biases into one lane-dense buffer (numpy, call once)."""
    weights = [np.asarray(w, np.float32) for w in weights]
    biases = [np.asarray(b, np.float32) for b in biases]
    num_linear = len(weights)
    in_dim = state_dim + action_dim
    assert weights[0].shape[0] == in_dim
    out_dim = weights[-1].shape[1]

    C = _round_up(max(w.shape[1] for w in weights), LANE)
    bias_rows = _round_up(num_linear, SUBLANE)
    in_pad = _round_up(in_dim, SUBLANE)
    w0_off = bias_rows
    wh_off = bias_rows + in_pad
    total_rows = wh_off + (num_linear - 1) * C

    buf = np.zeros((total_rows, C), np.float32)
    for i, b in enumerate(biases):
        buf[i, : b.shape[0]] = b
    buf[w0_off:w0_off + in_dim, : weights[0].shape[1]] = weights[0]
    for i in range(1, num_linear):
        w = weights[i]
        din, dout = w.shape
        r0 = wh_off + (i - 1) * C
        buf[r0:r0 + din, :dout] = w

    layout = dict(C=C, in_dim=in_dim, in_pad=in_pad, w0_off=w0_off, wh_off=wh_off,
                  total_rows=total_rows, out_dim=out_dim,
                  out_pad=_round_up(out_dim, SUBLANE), num_hidden=num_linear - 1)
    return jnp.asarray(buf, dtype=param_dtype), layout


# ----------------------------------------------------------------------------- wrapper


def environment_model_forward(state, action, packed, layout, *, batch_tile=1024):
    """Fused concat + MLP forward.  `packed`/`layout` come from pack_params (built once)."""
    state = state.astype(jnp.float32)
    action = action.astype(jnp.float32)
    B, state_dim = state.shape
    action_dim = action.shape[1]
    in_dim = state_dim + action_dim
    assert in_dim == layout["in_dim"]

    C = layout["C"]
    in_pad = layout["in_pad"]
    out_dim = layout["out_dim"]
    out_pad = layout["out_pad"]
    total_rows = layout["total_rows"]
    num_hidden = layout["num_hidden"]

    # Fused concat (cheap wrapper op): one sublane-aligned (B, in_pad) input stream.
    x = jnp.concatenate([state, action], axis=1)
    if in_pad != in_dim:
        x = jnp.pad(x, ((0, 0), (0, in_pad - in_dim)))

    # Load-balanced batch tiling (multiple of 8); bound padding to < 8 rows per tile.
    batch_tile = max(SUBLANE, _round_up(int(batch_tile), SUBLANE))
    n_tiles = max(1, pl.cdiv(B, batch_tile))
    TB = _round_up(pl.cdiv(B, n_tiles), SUBLANE)
    # Keep >= 2 grid steps when possible so both v7x TensorCores engage (harmless on v5e/v6e).
    if B > SUBLANE and _round_up(B, TB) // TB < 2:
        TB = _round_up(pl.cdiv(TB, 2), SUBLANE)
    Bp = _round_up(B, TB)
    if Bp != B:
        x = jnp.pad(x, ((0, Bp - B), (0, 0)))
    grid = (Bp // TB,)

    # Padded-MXU flops; narrowed output bytes; params counted once (constant index_map).
    flops = 2 * Bp * (in_pad * C + num_hidden * C * C)
    bytes_accessed = (4 * Bp * (in_pad + out_pad)
                      + total_rows * C * jnp.dtype(packed.dtype).itemsize)
    cost = pl.CostEstimate(flops=flops, transcendentals=0, bytes_accessed=bytes_accessed)

    kernel = partial(
        _mlp_kernel,
        in_pad=in_pad,
        num_hidden=num_hidden,
        out_pad=out_pad,
        w0_off=layout["w0_off"],
        wh_off=layout["wh_off"],
    )

    out_padded = pl.pallas_call(
        kernel,
        out_shape=jax.ShapeDtypeStruct((Bp, out_pad), jnp.float32),
        grid=grid,
        in_specs=[
            pl.BlockSpec((TB, in_pad), lambda i: (i, 0)),
            # Single packed params buffer, constant index_map -> one DMA, VMEM-resident.
            pl.BlockSpec((total_rows, C), lambda i: (0, 0)),
        ],
        out_specs=pl.BlockSpec((TB, out_pad), lambda i: (i, 0)),
        compiler_params=pltpu.CompilerParams(dimension_semantics=("parallel",)),
        cost_estimate=cost,
    )(x, packed)

    # Tiny slice: drop padded batch rows and the (out_pad - out_dim) zero lanes.
    return out_padded[:B, :out_dim]


# ----------------------------------------------------------------------------- init / reference


def init_params(key, state_dim, action_dim, hidden_dim, hidden_layers):
    """Deterministic init mimicking torch.nn.Linear default (U[-1/sqrt(fan_in), +1/sqrt(fan_in)])."""
    dims = [state_dim + action_dim] + [hidden_dim] * hidden_layers + [state_dim + 1]
    weights, biases = [], []
    for i in range(len(dims) - 1):
        fan_in, fan_out = dims[i], dims[i + 1]
        key, kw, kb = jax.random.split(key, 3)
        bound = 1.0 / np.sqrt(fan_in)
        weights.append(jax.random.uniform(kw, (fan_in, fan_out), jnp.float32, -bound, bound))
        biases.append(jax.random.uniform(kb, (fan_out,), jnp.float32, -bound, bound))
    return weights, biases


def reference_forward(state, action, weights, biases, num_hidden_layers):
    """Pure-JAX reference for correctness check."""
    x = jnp.concatenate([state, action], axis=1).astype(jnp.float32)
    for i, (w, b) in enumerate(zip(weights, biases)):
        x = x @ w + b
        if i < num_hidden_layers:
            x = jnp.maximum(x, 0.0)
    return x


if __name__ == "__main__":
    # Small CartPole-like configuration.
    state_dim = 4
    action_dim = 2
    hidden_dim = 32
    hidden_layers = 2

    key = jax.random.PRNGKey(0)
    key, kp = jax.random.split(key)
    weights, biases = init_params(kp, state_dim, action_dim, hidden_dim, hidden_layers)

    # Pack once (host-side numpy), reuse across forward calls.
    packed, layout = pack_params(weights, biases, state_dim, action_dim,
                                 param_dtype=jnp.float32)

    for batch in (8, 300):  # small batch + a batch that exercises tiling/padding and 2 grid steps
        key, ks, ka = jax.random.split(key, 3)
        state = jax.random.normal(ks, (batch, state_dim), jnp.float32)
        action = jax.random.normal(ka, (batch, action_dim), jnp.float32)

        out = environment_model_forward(state, action, packed, layout)
        out = jax.block_until_ready(out)

        ref = reference_forward(state, action, weights, biases, hidden_layers)
        np.testing.assert_allclose(np.asarray(out), np.asarray(ref), rtol=1e-4, atol=1e-5)
        assert out.shape == (batch, state_dim + 1)

    print("KERNEL_OK")
</pallas_src>

<mosaic_0001>
module attributes {stable_mosaic.version = 11 : i64} {
  func.func @_mlp_kernel(%arg0: i32, %arg1: memref<8x8xf32, #tpu.memory_space<vmem>>, %arg2: memref<272x128xf32, #tpu.memory_space<vmem>>, %arg3: memref<8x8xf32, #tpu.memory_space<vmem>>) attributes {dimension_semantics = [#tpu.dimension_semantics<parallel>], iteration_bounds = array<i64: 1>, scalar_prefetch = 0 : i64, scratch_operands = 0 : i64, tpu.core_type = #tpu.core_type<tc>, window_params = [{transform_indices = @transform_0, window_bounds = array<i64: 8, 8>}, {pipeline_mode = #tpu.pipeline_mode<synchronous>, transform_indices = @transform_1, window_bounds = array<i64: 272, 128>}, {transform_indices = @transform_2, window_bounds = array<i64: 8, 8>}]} {
    %c8 = arith.constant 8 : index
    %c0 = arith.constant 0 : index
    %0 = vector.load %arg2[%c8, %c0] : memref<272x128xf32, #tpu.memory_space<vmem>>, vector<8x128xf32>
    %c0_0 = arith.constant 0 : index
    %c0_1 = arith.constant 0 : index
    %1 = vector.load %arg2[%c0_0, %c0_1] : memref<272x128xf32, #tpu.memory_space<vmem>>, vector<1x128xf32>
    %c0_2 = arith.constant 0 : index
    %c0_3 = arith.constant 0 : index
    %2 = vector.load %arg1[%c0_2, %c0_3] : memref<8x8xf32, #tpu.memory_space<vmem>>, vector<8x8xf32>
    %cst = arith.constant dense<0.000000e+00> : vector<8x128xf32>
    %3 = tpu.matmul %2, %0, %cst {dimension_numbers = #tpu.dot_dimension_numbers<[1], [0], [0], [1], [0, 0, 1, 1], [], []>} : vector<8x8xf32>, vector<8x128xf32>, vector<8x128xf32> -> vector<8x128xf32>
    %4 = vector.broadcast %1 : vector<1x128xf32> to vector<8x128xf32>
    %5 = arith.addf %3, %4 : vector<8x128xf32>
    %cst_4 = arith.constant 0.000000e+00 : f32
    %6 = vector.broadcast %cst_4 : f32 to vector<8x128xf32>
    %7 = arith.maximumf %5, %6 : vector<8x128xf32>
    %c16 = arith.constant 16 : index
    %c0_5 = arith.constant 0 : index
    %8 = vector.load %arg2[%c16, %c0_5] : memref<272x128xf32, #tpu.memory_space<vmem>>, vector<128x128xf32>
    %c1 = arith.constant 1 : index
    %c0_6 = arith.constant 0 : index
    %9 = vector.load %arg2[%c1, %c0_6] : memref<272x128xf32, #tpu.memory_space<vmem>>, vector<1x128xf32>
    %cst_7 = arith.constant dense<0.000000e+00> : vector<8x128xf32>
    %10 = tpu.matmul %7, %8, %cst_7 {dimension_numbers = #tpu.dot_dimension_numbers<[1], [0], [0], [1], [0, 0, 1, 1], [], []>} : vector<8x128xf32>, vector<128x128xf32>, vector<8x128xf32> -> vector<8x128xf32>
    %11 = vector.broadcast %9 : vector<1x128xf32> to vector<8x128xf32>
    %12 = arith.addf %10, %11 : vector<8x128xf32>
    %cst_8 = arith.constant 0.000000e+00 : f32
    %13 = vector.broadcast %cst_8 : f32 to vector<8x128xf32>
    %14 = arith.maximumf %12, %13 : vector<8x128xf32>
    %c144 = arith.constant 144 : index
    %c0_9 = arith.constant 0 : index
    %15 = vector.load %arg2[%c144, %c0_9] : memref<272x128xf32, #tpu.memory_space<vmem>>, vector<128x128xf32>
    %c2 = arith.constant 2 : index
    %c0_10 = arith.constant 0 : index
    %16 = vector.load %arg2[%c2, %c0_10] : memref<272x128xf32, #tpu.memory_space<vmem>>, vector<1x128xf32>
    %cst_11 = arith.constant dense<0.000000e+00> : vector<8x128xf32>
    %17 = tpu.matmul %14, %15, %cst_11 {dimension_numbers = #tpu.dot_dimension_numbers<[1], [0], [0], [1], [0, 0, 1, 1], [], []>} : vector<8x128xf32>, vector<128x128xf32>, vector<8x128xf32> -> vector<8x128xf32>
    %18 = vector.broadcast %16 : vector<1x128xf32> to vector<8x128xf32>
    %19 = arith.addf %17, %18 : vector<8x128xf32>
    %20 = vector.extract_strided_slice %19 {offsets = [0, 0], sizes = [8, 8], strides = [1, 1]} : vector<8x128xf32> to vector<8x8xf32>
    %c0_12 = arith.constant 0 : index
    %c0_13 = arith.constant 0 : index
    %21 = vector.load %arg3[%c0_12, %c0_13] : memref<8x8xf32, #tpu.memory_space<vmem>>, vector<8x8xf32>
    tpu.vector_store %arg3[%c0_12, %c0_13], %20 {strides = array<i32>} : memref<8x8xf32, #tpu.memory_space<vmem>>, vector<8x8xf32>,
    return
  }
  func.func @transform_0(%arg0: i32) -> (i32, i32) {
    %c0_i32 = arith.constant 0 : i32
    %c0_i32_0 = arith.constant 0 : i32
    return %arg0, %c0_i32 : i32, i32
  }
  func.func @transform_1(%arg0: i32) -> (i32, i32) {
    %c0_i32 = arith.constant 0 : i32
    %c0_i32_0 = arith.constant 0 : i32
    %c0_i32_1 = arith.constant 0 : i32
    return %c0_i32, %c0_i32_0 : i32, i32
  }
  func.func @transform_2(%arg0: i32) -> (i32, i32) {
    %c0_i32 = arith.constant 0 : i32
    %c0_i32_0 = arith.constant 0 : i32
    return %arg0, %c0_i32 : i32, i32
  }
}

</mosaic_0001>

<llo_original>
// kernel: tpu_custom_call.1
$region0: #{tpu_custom_call.1}
  #allocation0 [shape = 'u32[]', space=smem, size = 0x4, offset = 0x4, fixed_abs, tag = 'smem constant byte address 0x4 - core index']
  #allocation1 [shape = 'u32[144,128]{1,0:T(1,128)}', space=vmem, size = 0x12000, scoped, tag = 'internal scratch']
  %s0 = inlined_call_operand.hbm [shape: f32[8,8], index: 0, kind: input, shape index: {}]
  %s1 = inlined_call_operand.hbm [shape: f32[272,128], index: 1, kind: input, shape index: {}]
  %s2 = inlined_call_operand.hbm [shape: f32[8,8], index: 2, kind: output, shape index: {}]
  %s3 = sld [smem:[#allocation0]]
  $region26: #{tpu_custom_call.1} parent=0
    _
  %s5 = ssub.s32 1, %s3
  %s6 = scalar_select 0, %s5, %s3
  $region1: #{tpu_custom_call.1} parent=0
    #allocation2 [shape = 'u8[4096]{0}', space=vmem, size = 0x1000, scoped, tag = 'input window, operand 0, single buffered']
    #allocation3 [shape = 's32[1]{0}', space=sflag, size = 0x4, scoped, tag = 'scoped memory for tpu_custom_call.1']
    #allocation4 [shape = 's32[1]{0}', space=sflag, size = 0x4, scoped, tag = 'scoped memory for tpu_custom_call.1']
    #allocation5 [shape = 'u8[139264]{0}', space=vmem, size = 0x22000, scoped, tag = 'input window, operand 1, single buffered']
    #allocation6 [shape = 's32[1]{0}', space=sflag, size = 0x4, scoped, tag = 'scoped memory for tpu_custom_call.1']
    #allocation7 [shape = 'u8[4096]{0}', space=vmem, size = 0x1000, scoped, tag = 'output window, operand 0, single buffered']
    %7 = vsyncpa [#allocation3], 0
    %8 = vsyncpa [#allocation6], 0
    %9 = vsyncpa [#allocation4], 0
    // Predicated region
    $region2: #{tpu_custom_call.1} parent=1 // pred_check
      _
    $region3: #{tpu_custom_call.1} parent=1 // pred_check_branch
      %11 = sbr.rel (0) target = $region5
    $region4: #{tpu_custom_call.1} parent=1 // pred_region
      %s13 = ssub.s32 128, 128
      %14 = vsyncadd [#allocation3], %s13
      %s16 = sshll.u32 [#allocation2], 4
      %s17 = int_to_ptr.vmem [resolvable:$true] %s16
      %19 = dma.hbm_to_vmem [thread:$0]  %s0, 128, %s17, [#allocation3]
    $region5: #{tpu_custom_call.1} parent=1 // pred_fallthru
      _
    // Predicated region
    $region6: #{tpu_custom_call.1} parent=1 // pred_check
      _
    $region7: #{tpu_custom_call.1} parent=1 // pred_check_branch
      %21 = sbr.rel (0) target = $region9
    $region8: #{tpu_custom_call.1} parent=1 // pred_region
      %s23 = ssub.s32 4352, 4352
      %24 = vsyncadd [#allocation6], %s23
      %s25 = sshll.u32 [#allocation5], 4
      %s26 = int_to_ptr.vmem [resolvable:$true] %s25
      %31 = dma.hbm_to_vmem [thread:$0]  %s1, 4352, %s26, [#allocation6], 128, 128, 8
    $region9: #{tpu_custom_call.1} parent=1 // pred_fallthru
      _
    // Predicated region
    $region10: #{tpu_custom_call.1} parent=1 // pred_check
      _
    $region11: #{tpu_custom_call.1} parent=1 // pred_check_branch
      %33 = sbr.rel (0) target = $region13
    $region12: #{tpu_custom_call.1} parent=1 // pred_region
      %34 = dma.done [#allocation3], 128
    $region13: #{tpu_custom_call.1} parent=1 // pred_fallthru
      _
    // Predicated region
    $region14: #{tpu_custom_call.1} parent=1 // pred_check
      _
    $region15: #{tpu_custom_call.1} parent=1 // pred_check_branch
      %36 = sbr.rel (0) target = $region17
    $region16: #{tpu_custom_call.1} parent=1 // pred_region
      %37 = dma.done [#allocation6], 4352
    $region17: #{tpu_custom_call.1} parent=1 // pred_fallthru
      _
    %v38 = vld [vmem:[#allocation5 + $0x8] sm:$0xff]
    %v39 = vld [vmem:[#allocation5] sm:$0x1]
    %v40 = vld [vmem:[#allocation2] sm:$0xff]
    %v41 = vlaneseq
    %v42 = vshrl.u32 %v41, 7
    %v43 = vsub.s32 0, %v42
    %v44 = vrot.slane %v39, %v43
    %vm45 = vcmask 64512
    %v47 = vsel %vm45, %v40, 0
    %49 = vmatprep.subr.mxu0 0.0
    %50 = vmatpush1.msra.mxu0 0.0
    %51 = vmatprep.subr.mxu0 0.0
    %52 = vmatpush1.msra.mxu0 0.0
    %53 = vmatprep.subr.mxu0 0.0
    %54 = vmatpush1.msra.mxu0 0.0
    %55 = vmatprep.subr.mxu0 0.0
    %56 = vmatpush1.msra.mxu0 0.0
    %57 = vmatprep.subr.mxu0 0.0
    %58 = vmatpush1.msra.mxu0 0.0
    %59 = vmatprep.subr.mxu0 0.0
    %60 = vmatpush1.msra.mxu0 0.0
    %61 = vmatprep.subr.mxu0 0.0
    %62 = vmatpush1.msra.mxu0 0.0
    %63 = vmatprep.subr.mxu0 0.0
    %64 = vmatpush1.msra.mxu0 0.0
    %65 = vmatprep.subr.mxu0 0.0
    %66 = vmatpush1.msra.mxu0 0.0
    %67 = vmatprep.subr.mxu0 0.0
    %68 = vmatpush1.msra.mxu0 0.0
    %69 = vmatprep.subr.mxu0 0.0
    %70 = vmatpush1.msra.mxu0 0.0
    %71 = vmatprep.subr.mxu0 0.0
    %72 = vmatpush1.msra.mxu0 0.0
    %73 = vmatprep.subr.mxu0 0.0
    %74 = vmatpush1.msra.mxu0 0.0
    %75 = vmatprep.subr.mxu0 0.0
    %76 = vmatpush1.msra.mxu0 0.0
    %77 = vmatprep.subr.mxu0 0.0
    %78 = vmatpush1.msra.mxu0 0.0
    %79 = vmatprep.subr.mxu0 0.0
    %80 = vmatpush1.msra.mxu0 %v38
    %81 = vmatprep.subr.mxu0 0.0
    %82 = vmatpush2.msra.mxu0 0.0
    %83 = vmatprep.subr.mxu0 0.0
    %84 = vmatpush2.msra.mxu0 0.0
    %85 = vmatprep.subr.mxu0 0.0
    %86 = vmatpush2.msra.mxu0 0.0
    %87 = vmatprep.subr.mxu0 0.0
    %88 = vmatpush2.msra.mxu0 0.0
    %89 = vmatprep.subr.mxu0 0.0
    %90 = vmatpush2.msra.mxu0 0.0
    %91 = vmatprep.subr.mxu0 0.0
    %92 = vmatpush2.msra.mxu0 0.0
    %93 = vmatprep.subr.mxu0 0.0
    %94 = vmatpush2.msra.mxu0 0.0
    %95 = vmatprep.subr.mxu0 0.0
    %96 = vmatpush2.msra.mxu0 0.0
    %97 = vmatprep.subr.mxu0 0.0
    %98 = vmatpush2.msra.mxu0 0.0
    %99 = vmatprep.subr.mxu0 0.0
    %100 = vmatpush2.msra.mxu0 0.0
    %101 = vmatprep.subr.mxu0 0.0
    %102 = vmatpush2.msra.mxu0 0.0
    %103 = vmatprep.subr.mxu0 0.0
    %104 = vmatpush2.msra.mxu0 0.0
    %105 = vmatprep.subr.mxu0 0.0
    %106 = vmatpush2.msra.mxu0 0.0
    %107 = vmatprep.subr.mxu0 0.0
    %108 = vmatpush2.msra.mxu0 0.0
    %109 = vmatprep.subr.mxu0 0.0
    %110 = vmatpush2.msra.mxu0 0.0
    %111 = vmatprep.subr.mxu0 0.0
    %112 = vmatpush2.msra.mxu0 0.0
    %113 = vmatprep.mubr.f32.mxu0 0.0
    %114 = vmatmul.mubr.f32.gmra.mxu0 %v47
    %v115 = vpop.f32.mrf.mxu0
    %v116 = vadd.f32 %v44, %v115
    %v117 = vpop.f32.mrf.mxu0
    %118 = vdwg.mxu0
    %v119 = vmax.f32 %v116, 0.0
    %v120 = vld [vmem:[#allocation5 + $0x10] sm:$0xff]
    %v121 = vld [vmem:[#allocation5 + $0x18] sm:$0xff]
    %v122 = vld [vmem:[#allocation5 + $0x20] sm:$0xff]
    %v123 = vld [vmem:[#allocation5 + $0x28] sm:$0xff]
    %v124 = vld [vmem:[#allocation5 + $0x30] sm:$0xff]
    %v125 = vld [vmem:[#allocation5 + $0x38] sm:$0xff]
    %v126 = vld [vmem:[#allocation5 + $0x40] sm:$0xff]
    %v127 = vld [vmem:[#allocation5 + $0x48] sm:$0xff]
    %v128 = vld [vmem:[#allocation5 + $0x50] sm:$0xff]
    %v129 = vld [vmem:[#allocation5 + $0x58] sm:$0xff]
    %v130 = vld [vmem:[#allocation5 + $0x60] sm:$0xff]
    %v131 = vld [vmem:[#allocation5 + $0x68] sm:$0xff]
    %v132 = vld [vmem:[#allocation5 + $0x70] sm:$0xff]
    %v133 = vld [vmem:[#allocation5 + $0x78] sm:$0xff]
    %v134 = vld [vmem:[#allocation5 + $0x80] sm:$0xff]
    %v135 = vld [vmem:[#allocation5 + $0x88] sm:$0xff]
    %v136 = vld [vmem:[#allocation5 + $0x1] sm:$0x1]
    %v137 = vlaneseq
    %v138 = vshrl.u32 %v137, 7
    %v139 = vsub.s32 0, %v138
    %v140 = vrot.slane %v136, %v139
    %141 = vmatprep.subr.mxu0 0.0
    %142 = vmatpush1.msra.mxu0 %v135
    %143 = vmatprep.subr.mxu0 0.0
    %144 = vmatpush1.msra.mxu0 %v134
    %145 = vmatprep.subr.mxu0 0.0
    %146 = vmatpush1.msra.mxu0 %v133
    %147 = vmatprep.subr.mxu0 0.0
    %148 = vmatpush1.msra.mxu0 %v132
    %149 = vmatprep.subr.mxu0 0.0
    %150 = vmatpush1.msra.mxu0 %v131
    %151 = vmatprep.subr.mxu0 0.0
    %152 = vmatpush1.msra.mxu0 %v130
    %153 = vmatprep.subr.mxu0 0.0
    %154 = vmatpush1.msra.mxu0 %v129
    %155 = vmatprep.subr.mxu0 0.0
    %156 = vmatpush1.msra.mxu0 %v128
    %157 = vmatprep.subr.mxu0 0.0
    %158 = vmatpush1.msra.mxu0 %v127
    %159 = vmatprep.subr.mxu0 0.0
    %160 = vmatpush1.msra.mxu0 %v126
    %161 = vmatprep.subr.mxu0 0.0
    %162 = vmatpush1.msra.mxu0 %v125
    %163 = vmatprep.subr.mxu0 0.0
    %164 = vmatpush1.msra.mxu0 %v124
    %165 = vmatprep.subr.mxu0 0.0
    %166 = vmatpush1.msra.mxu0 %v123
    %167 = vmatprep.subr.mxu0 0.0
    %168 = vmatpush1.msra.mxu0 %v122
    %169 = vmatprep.subr.mxu0 0.0
    %170 = vmatpush1.msra.mxu0 %v121
    %171 = vmatprep.subr.mxu0 0.0
    %172 = vmatpush1.msra.mxu0 %v120
    %173 = vmatprep.subr.mxu0 0.0
    %174 = vmatpush2.msra.mxu0 0.0
    %175 = vmatprep.subr.mxu0 0.0
    %176 = vmatpush2.msra.mxu0 0.0
    %177 = vmatprep.subr.mxu0 0.0
    %178 = vmatpush2.msra.mxu0 0.0
    %179 = vmatprep.subr.mxu0 0.0
    %180 = vmatpush2.msra.mxu0 0.0
    %181 = vmatprep.subr.mxu0 0.0
    %182 = vmatpush2.msra.mxu0 0.0
    %183 = vmatprep.subr.mxu0 0.0
    %184 = vmatpush2.msra.mxu0 0.0
    %185 = vmatprep.subr.mxu0 0.0
    %186 = vmatpush2.msra.mxu0 0.0
    %187 = vmatprep.subr.mxu0 0.0
    %188 = vmatpush2.msra.mxu0 0.0
    %189 = vmatprep.subr.mxu0 0.0
    %190 = vmatpush2.msra.mxu0 0.0
    %191 = vmatprep.subr.mxu0 0.0
    %192 = vmatpush2.msra.mxu0 0.0
    %193 = vmatprep.subr.mxu0 0.0
    %194 = vmatpush2.msra.mxu0 0.0
    %195 = vmatprep.subr.mxu0 0.0
    %196 = vmatpush2.msra.mxu0 0.0
    %197 = vmatprep.subr.mxu0 0.0
    %198 = vmatpush2.msra.mxu0 0.0
    %199 = vmatprep.subr.mxu0 0.0
    %200 = vmatpush2.msra.mxu0 0.0
    %201 = vmatprep.subr.mxu0 0.0
    %202 = vmatpush2.msra.mxu0 0.0
    %203 = vmatprep.subr.mxu0 0.0
    %204 = vmatpush2.msra.mxu0 0.0
    %205 = vmatprep.mubr.f32.mxu0 0.0
    %206 = vmatmul.mubr.f32.gmra.mxu0 %v119
    %v207 = vpop.f32.mrf.mxu0
    %v208 = vadd.f32 %v140, %v207
    %v209 = vpop.f32.mrf.mxu0
    %210 = vdwg.mxu0
    %v211 = vmax.f32 %v208, 0.0
    %v212 = vld [vmem:[#allocation5 + $0x90] sm:$0xff]
    %v213 = vld [vmem:[#allocation5 + $0x98] sm:$0xff]
    %v214 = vld [vmem:[#allocation5 + $0xa0] sm:$0xff]
    %v215 = vld [vmem:[#allocation5 + $0xa8] sm:$0xff]
    %v216 = vld [vmem:[#allocation5 + $0xb0] sm:$0xff]
    %v217 = vld [vmem:[#allocation5 + $0xb8] sm:$0xff]
    %v218 = vld [vmem:[#allocation5 + $0xc0] sm:$0xff]
    %v219 = vld [vmem:[#allocation5 + $0xc8] sm:$0xff]
    %v220 = vld [vmem:[#allocation5 + $0xd0] sm:$0xff]
    %v221 = vld [vmem:[#allocation5 + $0xd8] sm:$0xff]
    %v222 = vld [vmem:[#allocation5 + $0xe0] sm:$0xff]
    %v223 = vld [vmem:[#allocation5 + $0xe8] sm:$0xff]
    %v224 = vld [vmem:[#allocation5 + $0xf0] sm:$0xff]
    %v225 = vld [vmem:[#allocation5 + $0xf8] sm:$0xff]
    %v226 = vld [vmem:[#allocation5 + $0x100] sm:$0xff]
    %v227 = vld [vmem:[#allocation5 + $0x108] sm:$0xff]
    %v228 = vld [vmem:[#allocation5 + $0x2] sm:$0x1]
    %v229 = vlaneseq
    %v230 = vshrl.u32 %v229, 7
    %v231 = vsub.s32 0, %v230
    %v232 = vrot.slane %v228, %v231
    %233 = vmatprep.subr.mxu0 0.0
    %234 = vmatpush1.msra.mxu0 %v227
    %235 = vmatprep.subr.mxu0 0.0
    %236 = vmatpush1.msra.mxu0 %v226
    %237 = vmatprep.subr.mxu0 0.0
    %238 = vmatpush1.msra.mxu0 %v225
    %239 = vmatprep.subr.mxu0 0.0
    %240 = vmatpush1.msra.mxu0 %v224
    %241 = vmatprep.subr.mxu0 0.0
    %242 = vmatpush1.msra.mxu0 %v223
    %243 = vmatprep.subr.mxu0 0.0
    %244 = vmatpush1.msra.mxu0 %v222
    %245 = vmatprep.subr.mxu0 0.0
    %246 = vmatpush1.msra.mxu0 %v221
    %247 = vmatprep.subr.mxu0 0.0
    %248 = vmatpush1.msra.mxu0 %v220
    %249 = vmatprep.subr.mxu0 0.0
    %250 = vmatpush1.msra.mxu0 %v219
    %251 = vmatprep.subr.mxu0 0.0
    %252 = vmatpush1.msra.mxu0 %v218
    %253 = vmatprep.subr.mxu0 0.0
    %254 = vmatpush1.msra.mxu0 %v217
    %255 = vmatprep.subr.mxu0 0.0
    %256 = vmatpush1.msra.mxu0 %v216
    %257 = vmatprep.subr.mxu0 0.0
    %258 = vmatpush1.msra.mxu0 %v215
    %259 = vmatprep.subr.mxu0 0.0
    %260 = vmatpush1.msra.mxu0 %v214
    %261 = vmatprep.subr.mxu0 0.0
    %262 = vmatpush1.msra.mxu0 %v213
    %263 = vmatprep.subr.mxu0 0.0
    %264 = vmatpush1.msra.mxu0 %v212
    %265 = vmatprep.subr.mxu0 0.0
    %266 = vmatpush2.msra.mxu0 0.0
    %267 = vmatprep.subr.mxu0 0.0
    %268 = vmatpush2.msra.mxu0 0.0
    %269 = vmatprep.subr.mxu0 0.0
    %270 = vmatpush2.msra.mxu0 0.0
    %271 = vmatprep.subr.mxu0 0.0
    %272 = vmatpush2.msra.mxu0 0.0
    %273 = vmatprep.subr.mxu0 0.0
    %274 = vmatpush2.msra.mxu0 0.0
    %275 = vmatprep.subr.mxu0 0.0
    %276 = vmatpush2.msra.mxu0 0.0
    %277 = vmatprep.subr.mxu0 0.0
    %278 = vmatpush2.msra.mxu0 0.0
    %279 = vmatprep.subr.mxu0 0.0
    %280 = vmatpush2.msra.mxu0 0.0
    %281 = vmatprep.subr.mxu0 0.0
    %282 = vmatpush2.msra.mxu0 0.0
    %283 = vmatprep.subr.mxu0 0.0
    %284 = vmatpush2.msra.mxu0 0.0
    %285 = vmatprep.subr.mxu0 0.0
    %286 = vmatpush2.msra.mxu0 0.0
    %287 = vmatprep.subr.mxu0 0.0
    %288 = vmatpush2.msra.mxu0 0.0
    %289 = vmatprep.subr.mxu0 0.0
    %290 = vmatpush2.msra.mxu0 0.0
    %291 = vmatprep.subr.mxu0 0.0
    %292 = vmatpush2.msra.mxu0 0.0
    %293 = vmatprep.subr.mxu0 0.0
    %294 = vmatpush2.msra.mxu0 0.0
    %295 = vmatprep.subr.mxu0 0.0
    %296 = vmatpush2.msra.mxu0 0.0
    %297 = vmatprep.mubr.f32.mxu0 0.0
    %298 = vmatmul.mubr.f32.gmra.mxu0 %v211
    %v299 = vpop.f32.mrf.mxu0
    %v300 = vadd.f32 %v232, %v299
    %v301 = vpop.f32.mrf.mxu0
    %302 = vdwg.mxu0
    %303 = vst.msk [vmem:[#allocation7] sm:$0xff] %vm45, %v300
    // Predicated region
    $region18: #{tpu_custom_call.1} parent=1 // pred_check
      _
    $region19: #{tpu_custom_call.1} parent=1 // pred_check_branch
      %305 = sbr.rel (0) target = $region21
    $region20: #{tpu_custom_call.1} parent=1 // pred_region
      %s307 = ssub.s32 128, 128
      %308 = vsyncadd [#allocation4], %s307
      %s310 = sshll.u32 [#allocation7], 4
      %s311 = int_to_ptr.vmem [resolvable:$true] %s310
      %313 = dma.vmem_to_hbm [thread:$0]  %s311, 128, %s2, [#allocation4]
    $region21: #{tpu_custom_call.1} parent=1 // pred_fallthru
      _
    // Predicated region
    $region22: #{tpu_custom_call.1} parent=1 // pred_check
      _
    $region23: #{tpu_custom_call.1} parent=1 // pred_check_branch
      %315 = sbr.rel (0) target = $region25
    $region24: #{tpu_custom_call.1} parent=1 // pred_region
      %316 = dma.done [#allocation4], 128
    $region25: #{tpu_custom_call.1} parent=1 // pred_fallthru
      _
    %317 = vsyncpa [#allocation3], 1
    %318 = vsyncpa [#allocation6], 1
    %319 = vsyncpa [#allocation4], 1

</llo_original>
